<compile_context>
chip_gen: v5e
topology: v5e:2x2
jax: 0.10.0
libtpu: 0.0.40
codegen_flags: <defaults>
</compile_context>

<pallas_src>
import jax
import jax.numpy as jnp
from jax.experimental import pallas as pl
from jax.experimental.pallas import tpu as pltpu

_NBUF = 8            # in-flight gather DMAs (semaphore slots)
_MAX_S_TILE = 512    # sequence rows processed per grid step


def _round_up(x: int, m: int) -> int:
    return (x + m - 1) // m * m


def make_positional_table(max_seq_len: int, embedding_dim: int) -> jnp.ndarray:
    """Replicates the `pos` buffer built in BERTEmbeddingBlock.__init__."""
    d = embedding_dim
    assert d % 2 == 0, "embedding_dim must be even (as in the PyTorch module)"
    k = jnp.arange(d // 2, dtype=jnp.float32)
    units = jnp.power(10000.0, 2.0 * k / d)                 # pos_units
    p = jnp.arange(max_seq_len, dtype=jnp.float32)[:, None]
    ang = p / units[None, :]                                # (L, D//2)
    pos = jnp.stack([jnp.sin(ang), jnp.cos(ang)], axis=-1)  # (L, D//2, 2)
    return pos.reshape(max_seq_len, d).astype(jnp.float32)


def _bert_embedding_kernel(ids_ref,      # SMEM (B*S_pad,) int32 (scalar prefetch)
                           seg_ref,      # VMEM (TS, 1) int32   segment ids
                           seg_tab_ref,  # VMEM (3, D)  f32     segment table
                           pos_ref,      # VMEM (TS, D) f32     positional rows
                           emb_hbm,      # HBM  (V, D)  f32     token table
                           out_ref,      # VMEM (TS, D) f32
                           gbuf,         # VMEM (TS, D) f32     gather scratch
                           sems):        # DMA semaphores (NBUF,)
    TS = out_ref.shape[0]
    base = (pl.program_id(0) * pl.num_programs(1) + pl.program_id(1)) * TS

    def start_gather(r):
        tok = ids_ref[base + r]
        pltpu.make_async_copy(emb_hbm.at[tok], gbuf.at[r],
                              sems.at[r % _NBUF]).start()

    # Prime the in-flight DMA window.
    @pl.loop(0, min(_NBUF, TS))
    def _(r):
        start_gather(r)

    # VPU work overlaps with in-flight gather DMAs:
    # segment embedding = 3-way lookup with selects (no MXU round trip).
    segs = seg_ref[...]                                     # (TS, 1) int32
    row0 = seg_tab_ref[0:1, :]                              # (1, D)
    row1 = seg_tab_ref[1:2, :]
    row2 = seg_tab_ref[2:3, :]
    seg_emb = jnp.where(segs == 0, row0,
                        jnp.where(segs == 1, row1, row2))   # (TS, D)
    out_ref[...] = pos_ref[...] + seg_emb

    # Wait row r; its semaphore slot is then free for row r + NBUF.
    @pl.loop(0, TS)
    def _(r):
        pltpu.make_async_copy(emb_hbm.at[0], gbuf.at[r],
                              sems.at[r % _NBUF]).wait()

        @pl.when(r + _NBUF < TS)
        def _():
            start_gather(r + _NBUF)

    # out = embedding(x) + pos[:S] + segment_embedding(segment_info)
    out_ref[...] = out_ref[...] + gbuf[...]


@jax.jit
def bert_embedding_block(ids, segment_info, emb_table, seg_table, pos_table):
    """Pallas implementation of BERTEmbeddingBlock.forward.

    ids:          (B, S) int32
    segment_info: (B, S) int32
    emb_table:    (V, D) float32
    seg_table:    (3, D) float32
    pos_table:    (max_seq_len, D) float32
    returns:      (B, S, D) float32
    """
    B, S = ids.shape
    V, D = emb_table.shape

    TS = min(_MAX_S_TILE, _round_up(S, 8))
    S_pad = _round_up(S, TS)
    n_s = S_pad // TS
    pad_s = S_pad - S

    ids_flat = jnp.pad(ids.astype(jnp.int32),
                       ((0, 0), (0, pad_s))).reshape(B * S_pad)
    seg_flat = jnp.pad(segment_info.astype(jnp.int32),
                       ((0, 0), (0, pad_s))).reshape(B * S_pad, 1)
    pos_pad = jnp.pad(pos_table[:S].astype(jnp.float32),
                      ((0, pad_s), (0, 0)))                    # (S_pad, D)

    out_flat = pl.pallas_call(
        _bert_embedding_kernel,
        out_shape=jax.ShapeDtypeStruct((B * S_pad, D), jnp.float32),
        grid_spec=pltpu.PrefetchScalarGridSpec(
            num_scalar_prefetch=1,                 # token ids -> SMEM
            grid=(B, n_s),
            in_specs=[
                pl.BlockSpec((TS, 1), lambda b, si, ids: (b * n_s + si, 0)),
                pl.BlockSpec((3, D), lambda b, si, ids: (0, 0)),
                pl.BlockSpec((TS, D), lambda b, si, ids: (si, 0)),
                pl.BlockSpec(memory_space=pl.ANY),             # token table (HBM)
            ],
            out_specs=pl.BlockSpec((TS, D), lambda b, si, ids: (b * n_s + si, 0)),
            scratch_shapes=[
                pltpu.VMEM((TS, D), jnp.float32),      # gathered token rows
                pltpu.SemaphoreType.DMA((_NBUF,)),     # gather DMA sems
            ]),
        compiler_params=pltpu.CompilerParams(
            dimension_semantics=("parallel", "parallel")),
    )(ids_flat, seg_flat, seg_table.astype(jnp.float32), pos_pad,
      emb_table.astype(jnp.float32))

    return out_flat.reshape(B, S_pad, D)[:, :S, :]


def _reference(ids, segment_info, emb_table, seg_table, pos_table):
    S = ids.shape[1]
    out = jnp.take(emb_table, ids, axis=0)
    out = out + pos_table[:S, :][None, :, :]
    out = out + jnp.take(seg_table, segment_info, axis=0)
    return out


if __name__ == "__main__":
    # Small shapes consistent with the module's forward.
    B, S, D = 2, 8, 32
    V = 64            # num_embeddings
    MAX_SEQ_LEN = 16  # max_seq_len

    key = jax.random.PRNGKey(0)
    k_emb, k_seg_tab, k_ids, k_seg = jax.random.split(key, 4)

    # Deterministic parameter init (nn.Embedding default: N(0, 1)).
    emb_table = jax.random.normal(k_emb, (V, D), dtype=jnp.float32)
    seg_table = jax.random.normal(k_seg_tab, (3, D), dtype=jnp.float32)
    pos_table = make_positional_table(MAX_SEQ_LEN, D)

    ids = jax.random.randint(k_ids, (B, S), 0, V, dtype=jnp.int32)
    segment_info = jax.random.randint(k_seg, (B, S), 0, 3, dtype=jnp.int32)

    out = bert_embedding_block(ids, segment_info, emb_table, seg_table,
                               pos_table)
    out = jax.block_until_ready(out)

    ref = _reference(ids, segment_info, emb_table, seg_table, pos_table)
    assert out.shape == (B, S, D) and out.dtype == jnp.float32
    assert jnp.allclose(out, ref, atol=1e-5, rtol=1e-5), "mismatch vs reference"

    print("KERNEL_OK")
</pallas_src>

<mosaic_0001>
module attributes {stable_mosaic.version = 11 : i64} {
  func.func @_bert_embedding_kernel(%arg0: i32, %arg1: i32, %arg2: memref<16xi32, #tpu.memory_space<smem>>, %arg3: memref<8x1xi32, #tpu.memory_space<vmem>>, %arg4: memref<3x32xf32, #tpu.memory_space<vmem>>, %arg5: memref<8x32xf32, #tpu.memory_space<vmem>>, %arg6: memref<64x32xf32, #tpu.memory_space<any>>, %arg7: memref<8x32xf32, #tpu.memory_space<vmem>>, %arg8: memref<8x32xf32, #tpu.memory_space<vmem>>, %arg9: memref<8x!tpu.dma_semaphore, #tpu.memory_space<semaphore_mem>>) attributes {dimension_semantics = [#tpu.dimension_semantics<parallel>, #tpu.dimension_semantics<parallel>], iteration_bounds = array<i64: 2, 1>, scalar_prefetch = 1 : i64, scratch_operands = 2 : i64, tpu.core_type = #tpu.core_type<tc>, window_params = [{transform_indices = @transform_0, window_bounds = array<i64: 8, 1>}, {pipeline_mode = #tpu.pipeline_mode<synchronous>, transform_indices = @transform_1, window_bounds = array<i64: 3, 32>}, {transform_indices = @transform_2, window_bounds = array<i64: 8, 32>}, {}, {transform_indices = @transform_4, window_bounds = array<i64: 8, 32>}]} {
    %c1_i32 = arith.constant 1 : i32
    %0 = arith.muli %arg0, %c1_i32 : i32
    %1 = arith.addi %0, %arg1 : i32
    %c8_i32 = arith.constant 8 : i32
    %2 = arith.muli %1, %c8_i32 : i32
    %c0_i32 = arith.constant 0 : i32
    %c8_i32_0 = arith.constant 8 : i32
    %3 = arith.addi %c0_i32, %c8_i32_0 : i32
    %c1_i32_1 = arith.constant 1 : i32
    scf.for %arg10 = %c0_i32 to %3 step %c1_i32_1  : i32 {
      %c1_i32_24 = arith.constant 1 : i32
      %32 = arith.muli %arg10, %c1_i32_24 : i32
      %c0_i32_25 = arith.constant 0 : i32
      %33 = arith.addi %c0_i32_25, %32 : i32
      %34 = arith.addi %2, %33 : i32
      %35 = arith.index_cast %34 : i32 to index
      %36 = memref.load %arg2[%35] : memref<16xi32, #tpu.memory_space<smem>>
      %c8_i32_26 = arith.constant 8 : i32
      %c0_i32_27 = arith.constant 0 : i32
      %37 = arith.cmpi eq, %c8_i32_26, %c0_i32_27 : i32
      %c1_i32_28 = arith.constant 1 : i32
      %38 = arith.select %37, %c1_i32_28, %c8_i32_26 : i32
      %39 = arith.remsi %33, %38 : i32
      %c0_i32_29 = arith.constant 0 : i32
      %40 = arith.cmpi ne, %39, %c0_i32_29 : i32
      %c0_i32_30 = arith.constant 0 : i32
      %41 = arith.cmpi slt, %39, %c0_i32_30 : i32
      %c0_i32_31 = arith.constant 0 : i32
      %42 = arith.cmpi slt, %38, %c0_i32_31 : i32
      %43 = arith.xori %41, %42 : i1
      %44 = arith.andi %43, %40 : i1
      %45 = arith.addi %39, %38 : i32
      %46 = arith.select %44, %45, %39 : i32
      %c0_i32_32 = arith.constant 0 : i32
      %47 = tpu.memref_slice %arg6[%36, %c0_i32_32] : memref<64x32xf32, #tpu.memory_space<any>> -> memref<1x32xf32, #tpu.memory_space<any>>
      %48 = tpu.memref_squeeze %47 : memref<1x32xf32, #tpu.memory_space<any>> -> memref<32xf32, #tpu.memory_space<any>>
      %c0_i32_33 = arith.constant 0 : i32
      %49 = tpu.memref_slice %arg8[%33, %c0_i32_33] : memref<8x32xf32, #tpu.memory_space<vmem>> -> memref<1x32xf32, #tpu.memory_space<vmem>>
      %50 = tpu.memref_squeeze %49 : memref<1x32xf32, #tpu.memory_space<vmem>> -> memref<32xf32, #tpu.memory_space<vmem>>
      %51 = tpu.memref_slice %arg9[%46] : memref<8x!tpu.dma_semaphore, #tpu.memory_space<semaphore_mem>> -> memref<1x!tpu.dma_semaphore, #tpu.memory_space<semaphore_mem>>
      %52 = tpu.memref_squeeze %51 : memref<1x!tpu.dma_semaphore, #tpu.memory_space<semaphore_mem>> -> memref<!tpu.dma_semaphore, #tpu.memory_space<semaphore_mem>>
      tpu.enqueue_dma source(%48 : memref<32xf32, #tpu.memory_space<any>>) target(%50 : memref<32xf32, #tpu.memory_space<vmem>>) target_semaphore(%52 : memref<!tpu.dma_semaphore, #tpu.memory_space<semaphore_mem>>)
    }
    %c8_i32_2 = arith.constant 8 : i32
    %c0 = arith.constant 0 : index
    %c0_3 = arith.constant 0 : index
    %4 = vector.load %arg3[%c0, %c0_3] : memref<8x1xi32, #tpu.memory_space<vmem>>, vector<8x1xi32>
    %c0_4 = arith.constant 0 : index
    %c0_5 = arith.constant 0 : index
    %5 = vector.load %arg4[%c0_4, %c0_5] : memref<3x32xf32, #tpu.memory_space<vmem>>, vector<1x32xf32>
    %c1 = arith.constant 1 : index
    %c0_6 = arith.constant 0 : index
    %6 = vector.load %arg4[%c1, %c0_6] : memref<3x32xf32, #tpu.memory_space<vmem>>, vector<1x32xf32>
    %c2 = arith.constant 2 : index
    %c0_7 = arith.constant 0 : index
    %7 = vector.load %arg4[%c2, %c0_7] : memref<3x32xf32, #tpu.memory_space<vmem>>, vector<1x32xf32>
    %c0_i32_8 = arith.constant 0 : i32
    %8 = vector.broadcast %c0_i32_8 : i32 to vector<8x1xi32>
    %9 = arith.cmpi eq, %4, %8 : vector<8x1xi32>
    %c1_i32_9 = arith.constant 1 : i32
    %10 = vector.broadcast %c1_i32_9 : i32 to vector<8x1xi32>
    %11 = arith.cmpi eq, %4, %10 : vector<8x1xi32>
    %12 = vector.shape_cast %11 : vector<8x1xi1> to vector<8x1xi1>
    %13 = vector.broadcast %12 : vector<8x1xi1> to vector<8x32xi1>
    %14 = vector.shape_cast %6 : vector<1x32xf32> to vector<1x32xf32>
    %15 = vector.broadcast %14 : vector<1x32xf32> to vector<8x32xf32>
    %16 = vector.shape_cast %7 : vector<1x32xf32> to vector<1x32xf32>
    %17 = vector.broadcast %16 : vector<1x32xf32> to vector<8x32xf32>
    %18 = arith.select %13, %15, %17 : vector<8x32xi1>, vector<8x32xf32>
    %19 = vector.shape_cast %9 : vector<8x1xi1> to vector<8x1xi1>
    %20 = vector.broadcast %19 : vector<8x1xi1> to vector<8x32xi1>
    %21 = vector.shape_cast %5 : vector<1x32xf32> to vector<1x32xf32>
    %22 = vector.broadcast %21 : vector<1x32xf32> to vector<8x32xf32>
    %23 = arith.select %20, %22, %18 : vector<8x32xi1>, vector<8x32xf32>
    %c0_10 = arith.constant 0 : index
    %c0_11 = arith.constant 0 : index
    %24 = vector.load %arg5[%c0_10, %c0_11] : memref<8x32xf32, #tpu.memory_space<vmem>>, vector<8x32xf32>
    %25 = arith.addf %24, %23 : vector<8x32xf32>
    %c0_12 = arith.constant 0 : index
    %c0_13 = arith.constant 0 : index
    %26 = vector.load %arg7[%c0_12, %c0_13] : memref<8x32xf32, #tpu.memory_space<vmem>>, vector<8x32xf32>
    tpu.vector_store %arg7[%c0_12, %c0_13], %25 {strides = array<i32>} : memref<8x32xf32, #tpu.memory_space<vmem>>, vector<8x32xf32>,
    %c0_i32_14 = arith.constant 0 : i32
    %c8_i32_15 = arith.constant 8 : i32
    %27 = arith.addi %c0_i32_14, %c8_i32_15 : i32
    %c1_i32_16 = arith.constant 1 : i32
    scf.for %arg10 = %c0_i32_14 to %27 step %c1_i32_16  : i32 {
      %c1_i32_24 = arith.constant 1 : i32
      %32 = arith.muli %arg10, %c1_i32_24 : i32
      %c0_i32_25 = arith.constant 0 : i32
      %33 = arith.addi %c0_i32_25, %32 : i32
      %c8_i32_26 = arith.constant 8 : i32
      %c0_i32_27 = arith.constant 0 : i32
      %34 = arith.cmpi eq, %c8_i32_26, %c0_i32_27 : i32
      %c1_i32_28 = arith.constant 1 : i32
      %35 = arith.select %34, %c1_i32_28, %c8_i32_26 : i32
      %36 = arith.remsi %33, %35 : i32
      %c0_i32_29 = arith.constant 0 : i32
      %37 = arith.cmpi ne, %36, %c0_i32_29 : i32
      %c0_i32_30 = arith.constant 0 : i32
      %38 = arith.cmpi slt, %36, %c0_i32_30 : i32
      %c0_i32_31 = arith.constant 0 : i32
      %39 = arith.cmpi slt, %35, %c0_i32_31 : i32
      %40 = arith.xori %38, %39 : i1
      %41 = arith.andi %40, %37 : i1
      %42 = arith.addi %36, %35 : i32
      %43 = arith.select %41, %42, %36 : i32
      %c0_i32_32 = arith.constant 0 : i32
      %c0_i32_33 = arith.constant 0 : i32
      %44 = tpu.memref_slice %arg6[%c0_i32_32, %c0_i32_33] : memref<64x32xf32, #tpu.memory_space<any>> -> memref<1x32xf32, #tpu.memory_space<any>>
      %45 = tpu.memref_squeeze %44 : memref<1x32xf32, #tpu.memory_space<any>> -> memref<32xf32, #tpu.memory_space<any>>
      %c0_i32_34 = arith.constant 0 : i32
      %46 = tpu.memref_slice %arg8[%33, %c0_i32_34] : memref<8x32xf32, #tpu.memory_space<vmem>> -> memref<1x32xf32, #tpu.memory_space<vmem>>
      %47 = tpu.memref_squeeze %46 : memref<1x32xf32, #tpu.memory_space<vmem>> -> memref<32xf32, #tpu.memory_space<vmem>>
      %48 = tpu.memref_slice %arg9[%43] : memref<8x!tpu.dma_semaphore, #tpu.memory_space<semaphore_mem>> -> memref<1x!tpu.dma_semaphore, #tpu.memory_space<semaphore_mem>>
      %49 = tpu.memref_squeeze %48 : memref<1x!tpu.dma_semaphore, #tpu.memory_space<semaphore_mem>> -> memref<!tpu.dma_semaphore, #tpu.memory_space<semaphore_mem>>
      tpu.wait_dma2 semaphore(%49 : memref<!tpu.dma_semaphore, #tpu.memory_space<semaphore_mem>>) src(%45 : memref<32xf32, #tpu.memory_space<any>>) dst(%47 : memref<32xf32, #tpu.memory_space<vmem>>)
      %c8_i32_35 = arith.constant 8 : i32
      %50 = arith.addi %33, %c8_i32_35 : i32
      %c8_i32_36 = arith.constant 8 : i32
      %51 = arith.cmpi slt, %50, %c8_i32_36 : i32
      %52 = arith.extui %51 : i1 to i32
      %c0_i32_37 = arith.constant 0 : i32
      %53 = arith.cmpi ne, %52, %c0_i32_37 : i32
      scf.if %53 {
        %c8_i32_38 = arith.constant 8 : i32
        %54 = arith.addi %33, %c8_i32_38 : i32
        %55 = arith.addi %2, %54 : i32
        %56 = arith.index_cast %55 : i32 to index
        %57 = memref.load %arg2[%56] : memref<16xi32, #tpu.memory_space<smem>>
        %c8_i32_39 = arith.constant 8 : i32
        %c0_i32_40 = arith.constant 0 : i32
        %58 = arith.cmpi eq, %c8_i32_39, %c0_i32_40 : i32
        %c1_i32_41 = arith.constant 1 : i32
        %59 = arith.select %58, %c1_i32_41, %c8_i32_39 : i32
        %60 = arith.remsi %54, %59 : i32
        %c0_i32_42 = arith.constant 0 : i32
        %61 = arith.cmpi ne, %60, %c0_i32_42 : i32
        %c0_i32_43 = arith.constant 0 : i32
        %62 = arith.cmpi slt, %60, %c0_i32_43 : i32
        %c0_i32_44 = arith.constant 0 : i32
        %63 = arith.cmpi slt, %59, %c0_i32_44 : i32
        %64 = arith.xori %62, %63 : i1
        %65 = arith.andi %64, %61 : i1
        %66 = arith.addi %60, %59 : i32
        %67 = arith.select %65, %66, %60 : i32
        %c0_i32_45 = arith.constant 0 : i32
        %68 = tpu.memref_slice %arg6[%57, %c0_i32_45] : memref<64x32xf32, #tpu.memory_space<any>> -> memref<1x32xf32, #tpu.memory_space<any>>
        %69 = tpu.memref_squeeze %68 : memref<1x32xf32, #tpu.memory_space<any>> -> memref<32xf32, #tpu.memory_space<any>>
        %c0_i32_46 = arith.constant 0 : i32
        %70 = tpu.memref_slice %arg8[%54, %c0_i32_46] : memref<8x32xf32, #tpu.memory_space<vmem>> -> memref<1x32xf32, #tpu.memory_space<vmem>>
        %71 = tpu.memref_squeeze %70 : memref<1x32xf32, #tpu.memory_space<vmem>> -> memref<32xf32, #tpu.memory_space<vmem>>
        %72 = tpu.memref_slice %arg9[%67] : memref<8x!tpu.dma_semaphore, #tpu.memory_space<semaphore_mem>> -> memref<1x!tpu.dma_semaphore, #tpu.memory_space<semaphore_mem>>
        %73 = tpu.memref_squeeze %72 : memref<1x!tpu.dma_semaphore, #tpu.memory_space<semaphore_mem>> -> memref<!tpu.dma_semaphore, #tpu.memory_space<semaphore_mem>>
        tpu.enqueue_dma source(%69 : memref<32xf32, #tpu.memory_space<any>>) target(%71 : memref<32xf32, #tpu.memory_space<vmem>>) target_semaphore(%73 : memref<!tpu.dma_semaphore, #tpu.memory_space<semaphore_mem>>)
      } else {
      }
    }
    %c8_i32_17 = arith.constant 8 : i32
    %c0_18 = arith.constant 0 : index
    %c0_19 = arith.constant 0 : index
    %28 = vector.load %arg7[%c0_18, %c0_19] : memref<8x32xf32, #tpu.memory_space<vmem>>, vector<8x32xf32>
    %c0_20 = arith.constant 0 : index
    %c0_21 = arith.constant 0 : index
    %29 = vector.load %arg8[%c0_20, %c0_21] : memref<8x32xf32, #tpu.memory_space<vmem>>, vector<8x32xf32>
    %30 = arith.addf %28, %29 : vector<8x32xf32>
    %c0_22 = arith.constant 0 : index
    %c0_23 = arith.constant 0 : index
    %31 = vector.load %arg7[%c0_22, %c0_23] : memref<8x32xf32, #tpu.memory_space<vmem>>, vector<8x32xf32>
    tpu.vector_store %arg7[%c0_22, %c0_23], %30 {strides = array<i32>} : memref<8x32xf32, #tpu.memory_space<vmem>>, vector<8x32xf32>,
    return
  }
  func.func @transform_0(%arg0: i32, %arg1: i32, %arg2: memref<16xi32, #tpu.memory_space<smem>>) -> (i32, i32) {
    %c1_i32 = arith.constant 1 : i32
    %0 = arith.muli %arg0, %c1_i32 : i32
    %1 = arith.addi %0, %arg1 : i32
    %c0_i32 = arith.constant 0 : i32
    %c0_i32_0 = arith.constant 0 : i32
    return %1, %c0_i32 : i32, i32
  }
  func.func @transform_1(%arg0: i32, %arg1: i32, %arg2: memref<16xi32, #tpu.memory_space<smem>>) -> (i32, i32) {
    %c0_i32 = arith.constant 0 : i32
    %c0_i32_0 = arith.constant 0 : i32
    %c0_i32_1 = arith.constant 0 : i32
    return %c0_i32, %c0_i32_0 : i32, i32
  }
  func.func @transform_2(%arg0: i32, %arg1: i32, %arg2: memref<16xi32, #tpu.memory_space<smem>>) -> (i32, i32) {
    %c0_i32 = arith.constant 0 : i32
    %c0_i32_0 = arith.constant 0 : i32
    return %arg1, %c0_i32 : i32, i32
  }
  func.func @transform_4(%arg0: i32, %arg1: i32, %arg2: memref<16xi32, #tpu.memory_space<smem>>) -> (i32, i32) {
    %c1_i32 = arith.constant 1 : i32
    %0 = arith.muli %arg0, %c1_i32 : i32
    %1 = arith.addi %0, %arg1 : i32
    %c0_i32 = arith.constant 0 : i32
    %c0_i32_0 = arith.constant 0 : i32
    return %1, %c0_i32 : i32, i32
  }
}

</mosaic_0001>

<llo_original>
// kernel: bert_embedding_block.1
$region0: #{bert_embedding_block.1}
  #allocation0 [shape = 'u32[]', space=smem, size = 0x4, offset = 0x4, fixed_abs, tag = 'smem constant byte address 0x4 - core index']
  #allocation1 [shape = 'u32[72,128]{1,0:T(1,128)}', space=vmem, size = 0x9000, scoped, tag = 'internal scratch']
  #allocation2 [shape = 'f32[8,32]{1,0:T(8,128)}', space=vmem, size = 0x1000, scoped, tag = 'scratch operand']
  #allocation3 [shape = 's32[8]{0}', space=sflag, size = 0x20, scoped, tag = 'scratch operand']
  #allocation4 [shape = 's32[1]{0}', space=sflag, size = 0x4, scoped, tag = 'scoped memory for bert_embedding_block.1']
  #allocation5 [shape = 'u8[512]{0}', space=smem, size = 0x200, scoped, tag = 'prefetched SMEM operand 0']
  #allocation8 [shape = 's32[]', space=sflag, size = 0x4, offset = 0, fixed_abs, tag = 'sflag constant byte address 0x0 - dummy sync flag']
  #allocation9 [shape = 's32[]', space=sflag, size = 0x4, offset = 0, fixed_abs, tag = 'sflag constant byte address 0x0 - dummy sync flag']
  %s0 = inlined_call_operand.vmem [shape: s32[16], index: 0, kind: input, shape index: {}]
  %s1 = inlined_call_operand.vmem [shape: s32[16,1], index: 1, kind: input, shape index: {}]
  %s2 = inlined_call_operand.vmem [shape: f32[3,32], index: 2, kind: input, shape index: {}]
  %s3 = inlined_call_operand.vmem [shape: f32[8,32], index: 3, kind: input, shape index: {}]
  %s4 = inlined_call_operand.vmem [shape: f32[64,32], index: 4, kind: input, shape index: {}]
  %s5 = inlined_call_operand.hbm [shape: f32[16,32], index: 5, kind: output, shape index: {}]
  %s6 = sld [smem:[#allocation0]]
  $region123: #{bert_embedding_block.1} parent=0
    _
  %s8 = ssub.s32 1, %s6
  %s9 = scalar_select 0, %s8, %s6
  %s11 = sshll.u32 %s0, 4
  %s12 = int_to_ptr.vmem [resolvable:$true] %s11
  %14 = dma.vmem_to_smem %s12, 16, [#allocation5], [#allocation4]
  %16 = dma.done [#allocation4], 16
  %17 = sfence
  $region1: #{bert_embedding_block.1} parent=0
    #allocation6 [shape = 'u8[8192]{0}', space=vmem, size = 0x2000, scoped, tag = 'output window, operand 0']
    #allocation7 [shape = 's32[2]{0}', space=sflag, size = 0x8, scoped, tag = 'scoped memory for bert_embedding_block.1']
    %18 = vsyncpa [#allocation7], 0
    %s19 = scalar_lea.sflag [#allocation7], 1
    %20 = vsyncpa %s19, 0
    loop: start=0, step=1, limit=4
    $region2: #{bert_embedding_block.1} parent=1 // loop_pre_header
      _
    $region3: #{bert_embedding_block.1} parent=1 // loop_header
      %s22 = sphi 0, %s26
      %p23 = scmp.ge.s32.totalorder %s22, 4
      %s29 = sphi 0, %s41
      %s30 = sphi 0, %s37
      %s31 = sphi 0, %s29
      %s32 = sphi 0, %s30
      %s33 = sphi 0, %s31
      %s34 = sphi 0, %s32
      %s46 = sphi 0, %s48
      %s49 = sphi 0, %s46
      %s50 = sphi 0, %s49
      %s66 = sphi 0, %s50
      %s70 = sphi 0, %s70
      %s72 = sphi 0, %s70
      %s73 = sphi 0, %s72
      %s87 = sphi 0, %s73
      %s93 = sphi 0, %s95
      %s96 = sphi 0, %s93
      %s97 = sphi 0, %s96
      %s113 = sphi 0, %s97
      %s121 = sphi 0, %s123
      %s124 = sphi 0, %s121
      %s125 = sphi 0, %s124
      %s141 = sphi 0, %s125
    $region4: #{bert_embedding_block.1} parent=1 // loop_header_branch
      %25 = sbr.rel (%p23) target = $region8
    $region5: #{bert_embedding_block.1} parent=1 // loop_body
      %s27 = ssub.s32 %s22, 1
      %s28 = ssub.s32 %s22, 2
      %s35 = sadd.s32 1, %s30
      %p36 = scmp.ge.s32.totalorder %s35, 1
      %s37 = scalar_select %p36, 0, %s35
      %s38 = sadd.s32 1, %s29
      %s39 = scalar_select %p36, %s38, %s29
      %p40 = scmp.ge.s32.totalorder %s39, 2
      %s41 = scalar_select %p40, 0, %s39
      %s42 = sadd.s32 %s29, %s30
      %s43 = sadd.s32 %s41, %s37
      %s44 = ssub.s32 %s42, %s43
      %p45 = scmp.eq.s32.totalorder %s44, 0
      %s47 = sadd.s32 %s46, 1
      %s48 = scalar_select %p45, %s46, %s47
      %p51 = pneg %p45
      %p52 = scmp.eq.s32.totalorder %s22, 1
      %p53 = por %p51, %p52
      %p54 = scmp.ne.s32.totalorder %s46, %s49
      %p55 = scmp.eq.s32.totalorder %s22, 0
      %p56 = por %p54, %p55
      %p57 = scmp.ne.s32.totalorder %s46, %s49
      %p58 = scmp.eq.s32.totalorder %s27, 1
      %p59 = por %p57, %p58
      %p60 = scmp.ne.s32.totalorder %s49, %s50
      %p61 = scmp.eq.s32.totalorder %s27, 0
      %p62 = por %p60, %p61
      %p63 = scmp.ne.s32.totalorder %s49, %s50
      %p64 = scmp.eq.s32.totalorder %s28, 1
      %p65 = por %p63, %p64
      %p67 = scmp.ne.s32.totalorder %s50, %s66
      %p68 = scmp.eq.s32.totalorder %s28, 0
      %p69 = por %p67, %p68
      %s71 = sadd.s32 %s70, 1
      %p74 = scmp.eq.s32.totalorder %s22, 1
      %p75 = scmp.ne.s32.totalorder %s70, %s72
      %p76 = scmp.eq.s32.totalorder %s22, 0
      %p77 = por %p75, %p76
      %p78 = scmp.ne.s32.totalorder %s70, %s72
      %p79 = scmp.eq.s32.totalorder %s27, 1
      %p80 = por %p78, %p79
      %p81 = scmp.ne.s32.totalorder %s72, %s73
      %p82 = scmp.eq.s32.totalorder %s27, 0
      %p83 = por %p81, %p82
      %p84 = scmp.ne.s32.totalorder %s72, %s73
      %p85 = scmp.eq.s32.totalorder %s28, 1
      %p86 = por %p84, %p85
      %p88 = scmp.ne.s32.totalorder %s73, %s87
      %p89 = scmp.eq.s32.totalorder %s28, 0
      %p90 = por %p88, %p89
      %s91 = ssub.s32 %s30, %s37
      %p92 = scmp.eq.s32.totalorder %s91, 0
      %s94 = sadd.s32 %s93, 1
      %s95 = scalar_select %p92, %s93, %s94
      %p98 = pneg %p92
      %p99 = scmp.eq.s32.totalorder %s22, 1
      %p100 = por %p98, %p99
      %p101 = scmp.ne.s32.totalorder %s93, %s96
      %p102 = scmp.eq.s32.totalorder %s22, 0
      %p103 = por %p101, %p102
      %p104 = scmp.ne.s32.totalorder %s93, %s96
      %p105 = scmp.eq.s32.totalorder %s27, 1
      %p106 = por %p104, %p105
      %p107 = scmp.ne.s32.totalorder %s96, %s97
      %p108 = scmp.eq.s32.totalorder %s27, 0
      %p109 = por %p107, %p108
      %p110 = scmp.ne.s32.totalorder %s96, %s97
      %p111 = scmp.eq.s32.totalorder %s28, 1
      %p112 = por %p110, %p111
      %p114 = scmp.ne.s32.totalorder %s97, %s113
      %p115 = scmp.eq.s32.totalorder %s28, 0
      %p116 = por %p114, %p115
      %s117 = sadd.s32 %s29, %s30
      %s118 = sadd.s32 %s41, %s37
      %s119 = ssub.s32 %s117, %s118
      %p120 = scmp.eq.s32.totalorder %s119, 0
      %s122 = sadd.s32 %s121, 1
      %s123 = scalar_select %p120, %s121, %s122
      %p126 = pneg %p120
      %p127 = scmp.eq.s32.totalorder %s22, 1
      %p128 = por %p126, %p127
      %p129 = scmp.ne.s32.totalorder %s121, %s124
      %p130 = scmp.eq.s32.totalorder %s22, 0
      %p131 = por %p129, %p130
      %p132 = scmp.ne.s32.totalorder %s121, %s124
      %p133 = scmp.eq.s32.totalorder %s27, 1
      %p134 = por %p132, %p133
      %p135 = scmp.ne.s32.totalorder %s124, %s125
      %p136 = scmp.eq.s32.totalorder %s27, 0
      %p137 = por %p135, %p136
      %p138 = scmp.ne.s32.totalorder %s124, %s125
      %p139 = scmp.eq.s32.totalorder %s28, 1
      %p140 = por %p138, %p139
      %p142 = scmp.ne.s32.totalorder %s125, %s141
      %p143 = scmp.eq.s32.totalorder %s28, 0
      %p144 = por %p142, %p143
      %p145 = scmp.le.s32.totalorder 1, %s22
      %p146 = scmp.lt.s32.totalorder %s22, 3
      %p147 = pnand %p145, %p146
      %p148 = pneg %p147
      // Predicated region
      $region9: #{bert_embedding_block.1} parent=5 // pred_check
        _
      $region10: #{bert_embedding_block.1} parent=5 // pred_check_branch
        %150 = sbr.rel (%p147) target = $region12
      $region11: #{bert_embedding_block.1} parent=5 // pred_region
        %s151 = ssub.s32 %s22, 1
        // Predicated region
        $region13: #{bert_embedding_block.1} parent=11 // pred_check
          %p152 = pneg %p83
        $region14: #{bert_embedding_block.1} parent=11 // pred_check_branch
          %154 = sbr.rel (%p152) target = $region16
        $region15: #{bert_embedding_block.1} parent=11 // pred_region
          _
        $region16: #{bert_embedding_block.1} parent=11 // pred_fallthru
          _
        // Predicated region
        $region17: #{bert_embedding_block.1} parent=11 // pred_check
          %p155 = pneg %p109
        $region18: #{bert_embedding_block.1} parent=11 // pred_check_branch
          %157 = sbr.rel (%p155) target = $region20
        $region19: #{bert_embedding_block.1} parent=11 // pred_region
          %p158 = scmp.lt.s32.totalorder %s32, 0
          %s159 = scalar_select %p158, %s32, 0
          %s160 = smul.addr %s159, 8
          %s161 = scalar_lea.vmem %s3, %s160
        $region20: #{bert_embedding_block.1} parent=11 // pred_fallthru
          _
      $region12: #{bert_embedding_block.1} parent=5 // pred_fallthru
        _
      %p162 = scmp.lt.s32.totalorder %s22, 2
      // Predicated region
      $region21: #{bert_embedding_block.1} parent=5 // pred_check
        %p163 = pneg %p162
      $region22: #{bert_embedding_block.1} parent=5 // pred_check_branch
        %165 = sbr.rel (%p163) target = $region24
      $region23: #{bert_embedding_block.1} parent=5 // pred_region
        // Predicated region
        $region25: #{bert_embedding_block.1} parent=23 // pred_check
          %p166 = pneg %p56
        $region26: #{bert_embedding_block.1} parent=23 // pred_check_branch
          %168 = sbr.rel (%p166) target = $region28
        $region27: #{bert_embedding_block.1} parent=23 // pred_region
          %s169 = sadd.s32 %s29, %s30
          %p170 = scmp.lt.s32.totalorder %s169, 1
          %s171 = scalar_select %p170, %s169, 1
          %s172 = smul.addr %s171, 8
          %s173 = scalar_lea.vmem %s1, %s172
          %s174 = sadd.s32 %s29, %s30
        $region28: #{bert_embedding_block.1} parent=23 // pred_fallthru
          _
      $region24: #{bert_embedding_block.1} parent=5 // pred_fallthru
        _
      %p175 = scmp.le.s32.totalorder 1, %s22
      %p176 = scmp.lt.s32.totalorder %s22, 3
      %p177 = pnand %p175, %p176
      %p178 = pneg %p177
      // Predicated region
      $region29: #{bert_embedding_block.1} parent=5 // pred_check
        _
      $region30: #{bert_embedding_block.1} parent=5 // pred_check_branch
        %180 = sbr.rel (%p177) target = $region32
      $region31: #{bert_embedding_block.1} parent=5 // pred_region
        %s181 = ssub.s32 %s22, 1
        %s182 = sadd.s32 %s31, %s32
        %p183 = scmp.lt.s32.totalorder %s182, 1
        %s184 = scalar_select %p183, %s182, 1
        %s185 = smul.addr %s184, 8
        %s186 = scalar_lea.vmem %s1, %s185
        %p187 = pneg %p62
        %p188 = pneg %p59
        %p189 = pneg %p83
        %p190 = pneg %p80
        %p191 = scmp.lt.s32.totalorder %s32, 0
        %s192 = scalar_select %p191, %s32, 0
        %s193 = smul.addr %s192, 8
        %s194 = scalar_lea.vmem %s3, %s193
        %p195 = pneg %p109
        %p196 = pneg %p106
        %p197 = pneg %p137
        %p198 = pneg %p134
        %s199 = sand.u32 %s124, 1
        %s200 = scalar_lea.sflag [#allocation7], %s199
        %s201 = sand.u32 %s124, 1
        %s202 = smul.addr %s201, 8
        %s203 = scalar_lea.vmem [#allocation6], %s202
        %s204 = sadd.s32 %s31, %s32
        %p205 = scmp.lt.s32.totalorder %s204, 1
        %s206 = scalar_select %p205, %s204, 1
        %s207 = smul.addr %s206, 8
        %s208 = scalar_lea.vmem %s1, %s207
        %s209 = sadd.s32 %s31, %s32
        %p210 = scmp.lt.s32.totalorder %s32, 0
        %s211 = scalar_select %p210, %s32, 0
        %s212 = smul.addr %s211, 8
        %s213 = scalar_lea.vmem %s3, %s212
        %s214 = sadd.s32 %s31, %s32
        %s215 = sadd.s32 %s31, %s32
        %s216 = smul.u32 %s215, 8
        loop: start=0, step=1, limit=8
        $region33: #{bert_embedding_block.1} parent=31 // loop_pre_header
          _
        $region34: #{bert_embedding_block.1} parent=31 // loop_header
          %s218 = sphi 0, %s222
          %p219 = scmp.ge.s32.totalorder %s218, 8
        $region35: #{bert_embedding_block.1} parent=31 // loop_header_branch
          %221 = sbr.rel (%p219) target = $region39
        $region36: #{bert_embedding_block.1} parent=31 // loop_body
          %s223 = sadd.s32 %s216, %s218
          %s224 = sld [smem:[#allocation5 + %s223]]
          %p225 = scmp.lt.s32.totalorder %s218, 0
          %s226 = ssub.s32 0, %s218
          %s227 = scalar_select %p225, %s226, %s218
          %s228 = sand.u32 %s227, 7
          %s229 = ssub.s32 0, %s228
          %s230 = scalar_select %p225, %s229, %s228
          %p231 = scmp.ne.s32.totalorder %s230, 0
          %p232 = scmp.lt.s32.totalorder %s230, 0
          %p233 = pnand %p232, %p231
          %p234 = pneg %p233
          %s235 = sadd.s32 %s230, 8
          %s236 = scalar_select %p234, %s235, %s230
          %s237 = scalar_lea.vmem %s4, %s224
          %s238 = scalar_lea.vmem [#allocation2], %s218
          %s239 = scalar_lea.sflag [#allocation3], %s236
          // Predicated region
          $region40: #{bert_embedding_block.1} parent=36 // pred_check
            _
          $region41: #{bert_embedding_block.1} parent=36 // pred_check_branch
            %241 = sbr.rel target = $region43
          $region42: #{bert_embedding_block.1} parent=36 // pred_region
            // Predicated region
            $region55: #{bert_embedding_block.1} parent=42 // pred_check
              _
            $region56: #{bert_embedding_block.1} parent=42 // pred_check_branch
              %257 = sbr.rel (0) target = $region58
            $region57: #{bert_embedding_block.1} parent=42 // pred_region
              %s259 = ssub.s32 2, 1
              loop: start=0, step=1, limit=1
              $region59: #{bert_embedding_block.1} parent=57 // loop_pre_header
                _
              $region60: #{bert_embedding_block.1} parent=57 // loop_header
                %s261 = sphi 0, %s265
                %p262 = scmp.ge.s32.totalorder %s261, 1
                %s266 = sphi %s237, %s237
                %s267 = sphi %s238, %s238
              $region61: #{bert_embedding_block.1} parent=57 // loop_header_branch
                %264 = sbr.rel (%p262) target = $region65
              $region62: #{bert_embedding_block.1} parent=57 // loop_body
                %v268 = vld [vmem:[%s266] sm:%s259]
                %269 = vst [vmem:[%s267] sm:%s259] %v268
              $region63: #{bert_embedding_block.1} parent=57 // loop_footer
                %s265 = sadd.s32 1, %s261
              $region64: #{bert_embedding_block.1} parent=57 // loop_footer_branch
                %260 = sbr.rel target = $region60
              $region65: #{bert_embedding_block.1} parent=57 // loop_exit
                _
            $region58: #{bert_embedding_block.1} parent=42 // pred_fallthru
              _
          $region43: #{bert_embedding_block.1} parent=36 // pred_fallthru
            _
          // Predicated region
          $region44: #{bert_embedding_block.1} parent=36 // pred_check
            _
          $region45: #{bert_embedding_block.1} parent=36 // pred_check_branch
            %243 = sbr.rel (0) target = $region47
          $region46: #{bert_embedding_block.1} parent=36 // pred_region
            %s245 = ssub.s32 2, 1
            loop: start=0, step=1, limit=1
            $region48: #{bert_embedding_block.1} parent=46 // loop_pre_header
              _
            $region49: #{bert_embedding_block.1} parent=46 // loop_header
              %s247 = sphi 0, %s251
              %p248 = scmp.ge.s32.totalorder %s247, 1
              %s252 = sphi %s237, %s237
              %s253 = sphi %s238, %s238
            $region50: #{bert_embedding_block.1} parent=46 // loop_header_branch
              %250 = sbr.rel (%p248) target = $region54
            $region51: #{bert_embedding_block.1} parent=46 // loop_body
              %v254 = vld [vmem:[%s252] sm:%s245]
              %255 = vst [vmem:[%s253] sm:%s245] %v254
            $region52: #{bert_embedding_block.1} parent=46 // loop_footer
              %s251 = sadd.s32 1, %s247
            $region53: #{bert_embedding_block.1} parent=46 // loop_footer_branch
              %246 = sbr.rel target = $region49
            $region54: #{bert_embedding_block.1} parent=46 // loop_exit
              _
          $region47: #{bert_embedding_block.1} parent=36 // pred_fallthru
            _
          // Predicated region
          $region66: #{bert_embedding_block.1} parent=36 // pred_check
            _
          $region67: #{bert_embedding_block.1} parent=36 // pred_check_branch
            %272 = sbr.rel (0) target = $region69
          $region68: #{bert_embedding_block.1} parent=36 // pred_region
            %273 = vsyncadd %s239, 16
          $region69: #{bert_embedding_block.1} parent=36 // pred_fallthru
            _
        $region37: #{bert_embedding_block.1} parent=31 // loop_footer
          %s222 = sadd.s32 1, %s218
        $region38: #{bert_embedding_block.1} parent=31 // loop_footer_branch
          %217 = sbr.rel target = $region34
        $region39: #{bert_embedding_block.1} parent=31 // loop_exit
          _
        %v274 = vld [vmem:[%s208] sm:$0xff]
        %v275 = vld [vmem:[%s2] sm:$0x1]
        %v276 = vld [vmem:[%s2 + $0x1] sm:$0x1]
        %v277 = vld [vmem:[%s2 + $0x2] sm:$0x1]
        %vm278 = vcmp.eq.s32.totalorder %v274, 0
        %vm279 = vcmp.eq.s32.totalorder %v274, 1
        %v280 = vsel %vm279, 1, 0
        %281 = vset.pattern.permute.xlu0 0
        %282 = vperm.xlu0 %281, %v280
        %v283 = vpop.permute.xlu0 %282
        %vm284 = vcmp.eq.s32.totalorder %v283, 1
        %v285 = vperm.slane %v276, 0
        %v286 = vperm.slane %v277, 0
        %v287 = vsel %vm284, %v285, %v286
        %v288 = vsel %vm278, 1, 0
        %289 = vset.pattern.permute.xlu0 0
        %290 = vperm.xlu0 %289, %v288
        %v291 = vpop.permute.xlu0 %290
        %vm292 = vcmp.eq.s32.totalorder %v291, 1
        %v293 = vperm.slane %v275, 0
        %v294 = vsel %vm292, %v293, %v287
        %v295 = vld [vmem:[%s213] sm:$0xff]
        %v296 = vadd.f32 %v295, %v294
        %vm297 = vcmask 261120
        %298 = vst.msk [vmem:[%s203] sm:$0xff] %vm297, %v296
        loop: start=0, step=1, limit=8
        $region70: #{bert_embedding_block.1} parent=31 // loop_pre_header
          _
        $region71: #{bert_embedding_block.1} parent=31 // loop_header
          %s300 = sphi 0, %s304
          %p301 = scmp.ge.s32.totalorder %s300, 8
        $region72: #{bert_embedding_block.1} parent=31 // loop_header_branch
          %303 = sbr.rel (%p301) target = $region76
        $region73: #{bert_embedding_block.1} parent=31 // loop_body
          %p305 = scmp.lt.s32.totalorder %s300, 0
          %s306 = ssub.s32 0, %s300
          %s307 = scalar_select %p305, %s306, %s300
          %s308 = sand.u32 %s307, 7
          %s309 = ssub.s32 0, %s308
          %s310 = scalar_select %p305, %s309, %s308
          %p311 = scmp.ne.s32.totalorder %s310, 0
          %p312 = scmp.lt.s32.totalorder %s310, 0
          %p313 = pnand %p312, %p311
          %p314 = pneg %p313
          %s315 = sadd.s32 %s310, 8
          %s316 = scalar_select %p314, %s315, %s310
          %s317 = scalar_lea.sflag [#allocation3], %s316
          %319 = dma.done %s317, 16
          %s320 = sadd.s32 %s300, 8
          %p321 = scmp.lt.s32.totalorder %s320, 8
          // Predicated region
          $region77: #{bert_embedding_block.1} parent=73 // pred_check
            %p322 = pneg %p321
          $region78: #{bert_embedding_block.1} parent=73 // pred_check_branch
            %324 = sbr.rel (%p322) target = $region80
          $region79: #{bert_embedding_block.1} parent=73 // pred_region
            %s325 = sadd.s32 %s216, %s320
            %s326 = sld [smem:[#allocation5 + %s325]]
            %p327 = scmp.lt.s32.totalorder %s320, 0
            %s328 = ssub.s32 0, %s320
            %s329 = scalar_select %p327, %s328, %s320
            %s330 = sand.u32 %s329, 7
            %s331 = ssub.s32 0, %s330
            %s332 = scalar_select %p327, %s331, %s330
            %p333 = scmp.ne.s32.totalorder %s332, 0
            %p334 = scmp.lt.s32.totalorder %s332, 0
            %p335 = pnand %p334, %p333
            %p336 = pneg %p335
            %s337 = sadd.s32 %s332, 8
            %s338 = scalar_select %p336, %s337, %s332
            %s339 = scalar_lea.vmem %s4, %s326
            %s340 = scalar_lea.vmem [#allocation2], %s320
            %s341 = scalar_lea.sflag [#allocation3], %s338
            // Predicated region
            $region81: #{bert_embedding_block.1} parent=79 // pred_check
              _
            $region82: #{bert_embedding_block.1} parent=79 // pred_check_branch
              %343 = sbr.rel target = $region84
            $region83: #{bert_embedding_block.1} parent=79 // pred_region
              // Predicated region
              $region96: #{bert_embedding_block.1} parent=83 // pred_check
                _
              $region97: #{bert_embedding_block.1} parent=83 // pred_check_branch
                %359 = sbr.rel (0) target = $region99
              $region98: #{bert_embedding_block.1} parent=83 // pred_region
                %s361 = ssub.s32 2, 1
                loop: start=0, step=1, limit=1
                $region100: #{bert_embedding_block.1} parent=98 // loop_pre_header
                  _
                $region101: #{bert_embedding_block.1} parent=98 // loop_header
                  %s363 = sphi 0, %s367
                  %p364 = scmp.ge.s32.totalorder %s363, 1
                  %s368 = sphi %s339, %s339
                  %s369 = sphi %s340, %s340
                $region102: #{bert_embedding_block.1} parent=98 // loop_header_branch
                  %366 = sbr.rel (%p364) target = $region106
                $region103: #{bert_embedding_block.1} parent=98 // loop_body
                  %v370 = vld [vmem:[%s368] sm:%s361]
                  %371 = vst [vmem:[%s369] sm:%s361] %v370
                $region104: #{bert_embedding_block.1} parent=98 // loop_footer
                  %s367 = sadd.s32 1, %s363
                $region105: #{bert_embedding_block.1} parent=98 // loop_footer_branch
                  %362 = sbr.rel target = $region101
                $region106: #{bert_embedding_block.1} parent=98 // loop_exit
                  _
              $region99: #{bert_embedding_block.1} parent=83 // pred_fallthru
                _
            $region84: #{bert_embedding_block.1} parent=79 // pred_fallthru
              _
            // Predicated region
            $region85: #{bert_embedding_block.1} parent=79 // pred_check
              _
            $region86: #{bert_embedding_block.1} parent=79 // pred_check_branch
              %345 = sbr.rel (0) target = $region88
            $region87: #{bert_embedding_block.1} parent=79 // pred_region
              %s347 = ssub.s32 2, 1
              loop: start=0, step=1, limit=1
              $region89: #{bert_embedding_block.1} parent=87 // loop_pre_header
                _
              $region90: #{bert_embedding_block.1} parent=87 // loop_header
                %s349 = sphi 0, %s353
                %p350 = scmp.ge.s32.totalorder %s349, 1
                %s354 = sphi %s339, %s339
                %s355 = sphi %s340, %s340
              $region91: #{bert_embedding_block.1} parent=87 // loop_header_branch
                %352 = sbr.rel (%p350) target = $region95
              $region92: #{bert_embedding_block.1} parent=87 // loop_body
                %v356 = vld [vmem:[%s354] sm:%s347]
                %357 = vst [vmem:[%s355] sm:%s347] %v356
              $region93: #{bert_embedding_block.1} parent=87 // loop_footer
                %s353 = sadd.s32 1, %s349
              $region94: #{bert_embedding_block.1} parent=87 // loop_footer_branch
                %348 = sbr.rel target = $region90
              $region95: #{bert_embedding_block.1} parent=87 // loop_exit
                _
            $region88: #{bert_embedding_block.1} parent=79 // pred_fallthru
              _
            // Predicated region
            $region107: #{bert_embedding_block.1} parent=79 // pred_check
              _
            $region108: #{bert_embedding_block.1} parent=79 // pred_check_branch
              %374 = sbr.rel (0) target = $region110
            $region109: #{bert_embedding_block.1} parent=79 // pred_region
              %375 = vsyncadd %s341, 16
            $region110: #{bert_embedding_block.1} parent=79 // pred_fallthru
              _
          $region80: #{bert_embedding_block.1} parent=73 // pred_fallthru
            _
        $region74: #{bert_embedding_block.1} parent=31 // loop_footer
          %s304 = sadd.s32 1, %s300
        $region75: #{bert_embedding_block.1} parent=31 // loop_footer_branch
          %299 = sbr.rel target = $region71
        $region76: #{bert_embedding_block.1} parent=31 // loop_exit
          _
        %v376 = vld [vmem:[%s203] sm:$0xff]
        %v377 = vld [vmem:[#allocation2] sm:$0xff]
        %v378 = vadd.f32 %v376, %v377
        %379 = vst.msk [vmem:[%s203] sm:$0xff] %vm297, %v378
        %s380 = sand.u32 %s124, 1
        %s381 = scalar_lea.sflag [#allocation7], %s380
        %s382 = sand.u32 %s124, 1
        %s383 = smul.addr %s382, 8
        %s384 = scalar_lea.vmem [#allocation6], %s383
        // Predicated region
        $region111: #{bert_embedding_block.1} parent=31 // pred_check
          %p385 = pneg %p134
        $region112: #{bert_embedding_block.1} parent=31 // pred_check_branch
          %387 = sbr.rel (%p385) target = $region114
        $region113: #{bert_embedding_block.1} parent=31 // pred_region
          %s388 = sadd.s32 %s31, %s32
          %390 = vsyncadd %s381, 0
          %s391 = smul.addr %s388, 8
          %s392 = scalar_lea.hbm %s5, %s391
          %s394 = sshll.u32 %s384, 4
          %s395 = int_to_ptr.vmem [resolvable:$true] %s394
          %s396 = sshll.u32 %s392, 4
          %s397 = int_to_ptr.hbm [resolvable:$true] %s396
          %399 = dma.vmem_to_hbm [thread:$0]  %s395, 128, %s397, %s381
        $region114: #{bert_embedding_block.1} parent=31 // pred_fallthru
          _
      $region32: #{bert_embedding_block.1} parent=5 // pred_fallthru
        _
      %p400 = scmp.le.s32.totalorder 2, %s22
      // Predicated region
      $region115: #{bert_embedding_block.1} parent=5 // pred_check
        %p401 = pneg %p400
      $region116: #{bert_embedding_block.1} parent=5 // pred_check_branch
        %403 = sbr.rel (%p401) target = $region118
      $region117: #{bert_embedding_block.1} parent=5 // pred_region
        %s404 = ssub.s32 %s22, 2
        // Predicated region
        $region119: #{bert_embedding_block.1} parent=117 // pred_check
          %p405 = pneg %p140
        $region120: #{bert_embedding_block.1} parent=117 // pred_check_branch
          %407 = sbr.rel (%p405) target = $region122
        $region121: #{bert_embedding_block.1} parent=117 // pred_region
          %s408 = sand.u32 %s125, 1
          %s409 = scalar_lea.sflag [#allocation7], %s408
          %s410 = sand.u32 %s125, 1
          %s411 = smul.addr %s410, 8
          %s412 = scalar_lea.vmem [#allocation6], %s411
          %414 = dma.done %s409, 128
        $region122: #{bert_embedding_block.1} parent=117 // pred_fallthru
          _
      $region118: #{bert_embedding_block.1} parent=5 // pred_fallthru
        _
    $region6: #{bert_embedding_block.1} parent=1 // loop_footer
      %s26 = sadd.s32 1, %s22
    $region7: #{bert_embedding_block.1} parent=1 // loop_footer_branch
      %21 = sbr.rel target = $region3
    $region8: #{bert_embedding_block.1} parent=1 // loop_exit
      _
    %415 = vsyncpa [#allocation7], 1
    %s416 = scalar_lea.sflag [#allocation7], 1
    %417 = vsyncpa %s416, 1
  %418 = vsyncmov [#allocation3]
  %s419 = vpop.sfrf %418
  %p420 = scmp.eq.s32.totalorder %s419, 0
  %p421 = pneg %p420
  %423 = shalt.err (%p421)
  %s424 = scalar_lea.sflag [#allocation3], 1
  %425 = vsyncmov %s424
  %s426 = vpop.sfrf %425
  %p427 = scmp.eq.s32.totalorder %s426, 0
  %p428 = pneg %p427
  %430 = shalt.err (%p428)
  %s431 = scalar_lea.sflag [#allocation3], 2
  %432 = vsyncmov %s431
  %s433 = vpop.sfrf %432
  %p434 = scmp.eq.s32.totalorder %s433, 0
  %p435 = pneg %p434
  %437 = shalt.err (%p435)
  %s438 = scalar_lea.sflag [#allocation3], 3
  %439 = vsyncmov %s438
  %s440 = vpop.sfrf %439
  %p441 = scmp.eq.s32.totalorder %s440, 0
  %p442 = pneg %p441
  %444 = shalt.err (%p442)
  %s445 = scalar_lea.sflag [#allocation3], 4
  %446 = vsyncmov %s445
  %s447 = vpop.sfrf %446
  %p448 = scmp.eq.s32.totalorder %s447, 0
  %p449 = pneg %p448
  %451 = shalt.err (%p449)
  %s452 = scalar_lea.sflag [#allocation3], 5
  %453 = vsyncmov %s452
  %s454 = vpop.sfrf %453
  %p455 = scmp.eq.s32.totalorder %s454, 0
  %p456 = pneg %p455
  %458 = shalt.err (%p456)
  %s459 = scalar_lea.sflag [#allocation3], 6
  %460 = vsyncmov %s459
  %s461 = vpop.sfrf %460
  %p462 = scmp.eq.s32.totalorder %s461, 0
  %p463 = pneg %p462
  %465 = shalt.err (%p463)
  %s466 = scalar_lea.sflag [#allocation3], 7
  %467 = vsyncmov %s466
  %s468 = vpop.sfrf %467
  %p469 = scmp.eq.s32.totalorder %s468, 0
  %p470 = pneg %p469
  %472 = shalt.err (%p470)

</llo_original>
